<compile_context>
chip_gen: v5e
topology: v5e:2x2
jax: 0.10.0
libtpu: 0.0.40
codegen_flags: <defaults>
</compile_context>

<pallas_src>
import jax
import jax.numpy as jnp
from jax.experimental import pallas as pl
from jax.experimental.pallas import tpu as pltpu

HIDDEN_DIMS = (500, 500, 500, 1000)          # true PyTorch hidden sizes
HIDDEN_DIMS_PADDED = (512, 512, 512, 1024)   # lane-aligned (multiples of 128)

_VMEM_LIMIT = 48 * 1024 * 1024               # < 64 MiB (v7x physical VMEM), ample on v5e/v6e


def _round_up(x, m):
    return (x + m - 1) // m * m


def _pad2(a, rows, cols):
    return jnp.pad(a, ((0, rows - a.shape[0]), (0, cols - a.shape[1])))


# ----------------------------------------------------------------------------- kernels
def affine_kernel(x_ref, w_ref, b_ref, o_ref):
    """Collapsed decoder: o = x @ W_eff + b_eff (bf16 MXU inputs, f32 accumulate)."""
    o_ref[...] = (
        jnp.dot(x_ref[...], w_ref[...], preferred_element_type=jnp.float32)
        + b_ref[...]
    ).astype(o_ref.dtype)


def decoder_kernel(x_ref,
                   w1, b1, w2, b2, w3, b3, w4, b4, w5, b5,
                   o_ref):
    """Structure-faithful 5-layer MLP on one batch tile, fully VMEM-resident.

    bf16 MXU inputs, f32 accumulation, f32 bias add.  LeakyReLU(negative_slope=True->1.0)
    is the identity, so no activation code is emitted (exact).
    """
    def lin(h, w_ref, b_ref):
        return jnp.dot(h, w_ref[...], preferred_element_type=jnp.float32) + b_ref[...]

    h = x_ref[...]                                    # bf16 [tile, in_pad]
    h = lin(h, w1, b1).astype(jnp.bfloat16)           # identity activation omitted
    h = lin(h, w2, b2).astype(jnp.bfloat16)
    h = lin(h, w3, b3).astype(jnp.bfloat16)
    h = lin(h, w4, b4).astype(jnp.bfloat16)
    o_ref[...] = lin(h, w5, b5).astype(o_ref.dtype)   # lane-dense f32 store


# ----------------------------------------------------------------------------- wrapper
def _collapse_affine(params):
    """Fold the 5 affine layers into one (activations are identity); done in f32."""
    w_eff, b_eff = params[0]
    for w, b in params[1:]:
        b_eff = b_eff @ w + b
        w_eff = w_eff @ w
    return w_eff, b_eff


def reconstraction_forward(x, params, *, batch_tile=512, collapse=True):
    """x: [B, in_size] f32. params: list of (W[in,out] f32, b[out] f32). Returns [B, out] f32."""
    B, in_size = x.shape
    out_size = params[-1][0].shape[1]

    in_pad = _round_up(in_size, 128)
    out_pad = _round_up(out_size, 128)

    # Large, lane/sublane-aligned batch tiles; pad B up to a tile multiple, slice after.
    batch_tile = max(128, min(batch_tile, _round_up(B, 128)))
    B_pad = _round_up(B, batch_tile)
    grid = (B_pad // batch_tile,)

    # Cheap input padding: cast to bf16 first, then pad only the needed dims.
    x_p = jnp.pad(x.astype(jnp.bfloat16), ((0, B_pad - B), (0, in_pad - in_size)))

    compiler_params = pltpu.CompilerParams(
        dimension_semantics=("parallel",),   # batch tiles shard across v7x TensorCores
        vmem_limit_bytes=_VMEM_LIMIT,
    )

    if collapse:
        # ---- fast path: single matmul over the pre-collapsed affine map ----
        w_eff, b_eff = _collapse_affine(params)
        w_p = _pad2(w_eff, in_pad, out_pad).astype(jnp.bfloat16)
        b_p = jnp.pad(b_eff, (0, out_pad - out_size)).reshape(1, out_pad)

        flops = 2 * B_pad * in_pad * out_pad
        bytes_accessed = x_p.size * 2 + w_p.size * 2 + b_p.size * 4 + B_pad * out_pad * 4

        out = pl.pallas_call(
            affine_kernel,
            out_shape=jax.ShapeDtypeStruct((B_pad, out_pad), jnp.float32),
            grid_spec=pltpu.PrefetchScalarGridSpec(
                num_scalar_prefetch=0,
                grid=grid,
                in_specs=[
                    pl.BlockSpec((batch_tile, in_pad), lambda i: (i, 0)),
                    pl.BlockSpec((in_pad, out_pad), lambda i: (0, 0)),   # VMEM-resident
                    pl.BlockSpec((1, out_pad), lambda i: (0, 0)),        # VMEM-resident
                ],
                out_specs=pl.BlockSpec((batch_tile, out_pad), lambda i: (i, 0)),
            ),
            compiler_params=compiler_params,
            cost_estimate=pl.CostEstimate(
                flops=int(flops), transcendentals=0, bytes_accessed=int(bytes_accessed)
            ),
        )(x_p, w_p, b_p)
        return out[:B, :out_size]

    # ---- structure-faithful path: 5 resident layers per batch tile ----
    padded_dims = (in_pad,) + HIDDEN_DIMS_PADDED + (out_pad,)
    flat_params = []
    in_specs = [pl.BlockSpec((batch_tile, in_pad), lambda i: (i, 0))]
    for (w, b), din, dout in zip(params, padded_dims[:-1], padded_dims[1:]):
        w_p = _pad2(w, din, dout).astype(jnp.bfloat16)        # zero-pad is transparent
        b_p = jnp.pad(b, (0, dout - b.shape[0])).reshape(1, dout)  # f32 bias
        flat_params.extend([w_p, b_p])
        # constant index_map -> whole-array VMEM-resident block, never re-DMA'd per step
        in_specs.append(pl.BlockSpec(w_p.shape, lambda i: (0, 0)))
        in_specs.append(pl.BlockSpec(b_p.shape, lambda i: (0, 0)))

    flops = 2 * B_pad * sum(k * n for k, n in zip(padded_dims[:-1], padded_dims[1:]))
    bytes_accessed = (x_p.size * 2
                      + sum(p.size * p.dtype.itemsize for p in flat_params)
                      + B_pad * out_pad * 4)

    out = pl.pallas_call(
        decoder_kernel,
        out_shape=jax.ShapeDtypeStruct((B_pad, out_pad), jnp.float32),
        grid_spec=pltpu.PrefetchScalarGridSpec(
            num_scalar_prefetch=0,
            grid=grid,
            in_specs=in_specs,
            out_specs=pl.BlockSpec((batch_tile, out_pad), lambda i: (i, 0)),
        ),
        compiler_params=compiler_params,
        cost_estimate=pl.CostEstimate(
            flops=int(flops), transcendentals=0, bytes_accessed=int(bytes_accessed)
        ),
    )(x_p, *flat_params)
    return out[:B, :out_size]


# ----------------------------------------------------------------------------- params & ref
def init_params(key, in_size, out_size):
    """nn.Linear default init: U(-1/sqrt(fan_in), 1/sqrt(fan_in)), at the TRUE dims.

    Weights stored as [in, out] (transpose of PyTorch's [out, in]) so kernels do x @ W.
    """
    dims = (in_size,) + HIDDEN_DIMS + (out_size,)
    params = []
    for i in range(len(dims) - 1):
        fan_in, fan_out = dims[i], dims[i + 1]
        key, kw, kb = jax.random.split(key, 3)
        bound = float(fan_in) ** -0.5
        w = jax.random.uniform(kw, (fan_in, fan_out), jnp.float32, -bound, bound)
        b = jax.random.uniform(kb, (fan_out,), jnp.float32, -bound, bound)
        params.append((w, b))
    return params


def reference_forward_f32(x, params):
    """Pure f32 reference; LeakyReLU(negative_slope=True->1.0) between layers is identity."""
    h = x
    for w, b in params:
        h = h @ w + b
    return h


if __name__ == "__main__":
    in_size, out_size = 32, 64
    key = jax.random.PRNGKey(0)
    key, kx1, kx2 = jax.random.split(key, 3)
    params = init_params(key, in_size, out_size)

    # Small batch: single grid step; exercises padding/slicing of B, in and out dims.
    x_small = jax.random.normal(kx1, (48, in_size), jnp.float32)
    # Slightly larger batch with a 128-row tile: 3 grid steps; exercises the batch pipeline.
    x_multi = jax.random.normal(kx2, (272, in_size), jnp.float32)

    for x, tile in ((x_small, 512), (x_multi, 128)):
        ref = reference_forward_f32(x, params)
        out_fast = jax.block_until_ready(
            reconstraction_forward(x, params, batch_tile=tile, collapse=True))
        out_full = jax.block_until_ready(
            reconstraction_forward(x, params, batch_tile=tile, collapse=False))
        assert out_fast.shape == (x.shape[0], out_size)
        assert out_full.shape == (x.shape[0], out_size)
        assert jnp.allclose(out_fast, ref, atol=5e-2, rtol=5e-2), "collapsed path mismatch"
        assert jnp.allclose(out_full, ref, atol=5e-2, rtol=5e-2), "5-layer path mismatch"
        assert jnp.allclose(out_fast, out_full, atol=5e-2, rtol=5e-2), "path disagreement"

    print("KERNEL_OK")
</pallas_src>

<mosaic_0001>
module attributes {stable_mosaic.version = 11 : i64} {
  func.func @affine_kernel(%arg0: i32, %arg1: memref<128x128xbf16, #tpu.memory_space<vmem>>, %arg2: memref<128x128xbf16, #tpu.memory_space<vmem>>, %arg3: memref<1x128xf32, #tpu.memory_space<vmem>>, %arg4: memref<128x128xf32, #tpu.memory_space<vmem>>) attributes {dimension_semantics = [#tpu.dimension_semantics<parallel>], iteration_bounds = array<i64: 1>, scalar_prefetch = 0 : i64, scratch_operands = 0 : i64, tpu.core_type = #tpu.core_type<tc>, window_params = [{transform_indices = @transform_0, window_bounds = array<i64: 128, 128>}, {pipeline_mode = #tpu.pipeline_mode<synchronous>, transform_indices = @transform_1, window_bounds = array<i64: 128, 128>}, {pipeline_mode = #tpu.pipeline_mode<synchronous>, transform_indices = @transform_2, window_bounds = array<i64: 1, 128>}, {transform_indices = @transform_3, window_bounds = array<i64: 128, 128>}]} {
    %c0 = arith.constant 0 : index
    %c0_0 = arith.constant 0 : index
    %0 = vector.load %arg1[%c0, %c0_0] : memref<128x128xbf16, #tpu.memory_space<vmem>>, vector<128x128xbf16>
    %c0_1 = arith.constant 0 : index
    %c0_2 = arith.constant 0 : index
    %1 = vector.load %arg2[%c0_1, %c0_2] : memref<128x128xbf16, #tpu.memory_space<vmem>>, vector<128x128xbf16>
    %cst = arith.constant dense<0.000000e+00> : vector<128x128xf32>
    %2 = tpu.matmul %0, %1, %cst {dimension_numbers = #tpu.dot_dimension_numbers<[1], [0], [0], [1], [0, 0, 1, 1], [], []>} : vector<128x128xbf16>, vector<128x128xbf16>, vector<128x128xf32> -> vector<128x128xf32>
    %c0_3 = arith.constant 0 : index
    %c0_4 = arith.constant 0 : index
    %3 = vector.load %arg3[%c0_3, %c0_4] : memref<1x128xf32, #tpu.memory_space<vmem>>, vector<1x128xf32>
    %4 = vector.broadcast %3 : vector<1x128xf32> to vector<128x128xf32>
    %5 = arith.addf %2, %4 : vector<128x128xf32>
    %c0_5 = arith.constant 0 : index
    %c0_6 = arith.constant 0 : index
    %6 = vector.load %arg4[%c0_5, %c0_6] : memref<128x128xf32, #tpu.memory_space<vmem>>, vector<128x128xf32>
    tpu.vector_store %arg4[%c0_5, %c0_6], %5 {strides = array<i32>} : memref<128x128xf32, #tpu.memory_space<vmem>>, vector<128x128xf32>,
    return
  }
  func.func @transform_0(%arg0: i32) -> (i32, i32) {
    %c0_i32 = arith.constant 0 : i32
    %c0_i32_0 = arith.constant 0 : i32
    return %arg0, %c0_i32 : i32, i32
  }
  func.func @transform_1(%arg0: i32) -> (i32, i32) {
    %c0_i32 = arith.constant 0 : i32
    %c0_i32_0 = arith.constant 0 : i32
    %c0_i32_1 = arith.constant 0 : i32
    return %c0_i32, %c0_i32_0 : i32, i32
  }
  func.func @transform_2(%arg0: i32) -> (i32, i32) {
    %c0_i32 = arith.constant 0 : i32
    %c0_i32_0 = arith.constant 0 : i32
    %c0_i32_1 = arith.constant 0 : i32
    return %c0_i32, %c0_i32_0 : i32, i32
  }
  func.func @transform_3(%arg0: i32) -> (i32, i32) {
    %c0_i32 = arith.constant 0 : i32
    %c0_i32_0 = arith.constant 0 : i32
    return %arg0, %c0_i32 : i32, i32
  }
}

</mosaic_0001>

<llo_original>
// kernel: tpu_custom_call.1
$region0: #{tpu_custom_call.1}
  #allocation0 [shape = 'u32[]', space=smem, size = 0x4, offset = 0x4, fixed_abs, tag = 'smem constant byte address 0x4 - core index']
  #allocation1 [shape = 'u32[72,128]{1,0:T(1,128)}', space=vmem, size = 0x9000, scoped, tag = 'internal scratch']
  %s0 = inlined_call_operand.hbm [shape: bf16[128,128], index: 0, kind: input, shape index: {}]
  %s1 = inlined_call_operand.hbm [shape: bf16[128,128], index: 1, kind: input, shape index: {}]
  %s2 = inlined_call_operand.vmem [shape: f32[1,128], index: 2, kind: input, shape index: {}]
  %s3 = inlined_call_operand.hbm [shape: f32[128,128], index: 3, kind: output, shape index: {}]
  %s4 = sld [smem:[#allocation0]]
  $region30: #{tpu_custom_call.1} parent=0
    _
  %s6 = ssub.s32 1, %s4
  %s7 = scalar_select 0, %s6, %s4
  $region1: #{tpu_custom_call.1} parent=0
    #allocation2 [shape = 'u8[32768]{0}', space=vmem, size = 0x8000, scoped, tag = 'input window, operand 0, single buffered']
    #allocation3 [shape = 's32[1]{0}', space=sflag, size = 0x4, scoped, tag = 'scoped memory for tpu_custom_call.1']
    #allocation4 [shape = 's32[1]{0}', space=sflag, size = 0x4, scoped, tag = 'scoped memory for tpu_custom_call.1']
    #allocation5 [shape = 'u8[32768]{0}', space=vmem, size = 0x8000, scoped, tag = 'input window, operand 1, single buffered']
    #allocation6 [shape = 's32[1]{0}', space=sflag, size = 0x4, scoped, tag = 'scoped memory for tpu_custom_call.1']
    #allocation7 [shape = 'u8[65536]{0}', space=vmem, size = 0x10000, scoped, tag = 'output window, operand 0, single buffered']
    %8 = vsyncpa [#allocation3], 0
    %9 = vsyncpa [#allocation6], 0
    %10 = vsyncpa [#allocation4], 0
    // Predicated region
    $region2: #{tpu_custom_call.1} parent=1 // pred_check
      _
    $region3: #{tpu_custom_call.1} parent=1 // pred_check_branch
      %12 = sbr.rel (0) target = $region5
    $region4: #{tpu_custom_call.1} parent=1 // pred_region
      %14 = vsyncadd [#allocation3], 0
      %s15 = sshll.u32 %s0, 4
      %s16 = int_to_ptr.hbm [resolvable:$true] %s15
      %s17 = sshll.u32 [#allocation2], 4
      %s18 = int_to_ptr.vmem [resolvable:$true] %s17
      %23 = dma.hbm_to_vmem [thread:$0]  %s16, 1024, %s18, [#allocation3], 64, 64, 4
    $region5: #{tpu_custom_call.1} parent=1 // pred_fallthru
      _
    // Predicated region
    $region6: #{tpu_custom_call.1} parent=1 // pred_check
      _
    $region7: #{tpu_custom_call.1} parent=1 // pred_check_branch
      %25 = sbr.rel (0) target = $region9
    $region8: #{tpu_custom_call.1} parent=1 // pred_region
      %27 = vsyncadd [#allocation6], 0
      %s28 = sshll.u32 %s1, 4
      %s29 = int_to_ptr.hbm [resolvable:$true] %s28
      %s30 = sshll.u32 [#allocation5], 4
      %s31 = int_to_ptr.vmem [resolvable:$true] %s30
      %36 = dma.hbm_to_vmem [thread:$0]  %s29, 1024, %s31, [#allocation6], 64, 64, 4
    $region9: #{tpu_custom_call.1} parent=1 // pred_fallthru
      _
    // Predicated region
    $region10: #{tpu_custom_call.1} parent=1 // pred_check
      _
    $region11: #{tpu_custom_call.1} parent=1 // pred_check_branch
      %38 = sbr.rel (0) target = $region13
    $region12: #{tpu_custom_call.1} parent=1 // pred_region
      _
    $region13: #{tpu_custom_call.1} parent=1 // pred_fallthru
      _
    // Predicated region
    $region14: #{tpu_custom_call.1} parent=1 // pred_check
      _
    $region15: #{tpu_custom_call.1} parent=1 // pred_check_branch
      %40 = sbr.rel (0) target = $region17
    $region16: #{tpu_custom_call.1} parent=1 // pred_region
      %42 = dma.done [#allocation3], 1024
    $region17: #{tpu_custom_call.1} parent=1 // pred_fallthru
      _
    // Predicated region
    $region18: #{tpu_custom_call.1} parent=1 // pred_check
      _
    $region19: #{tpu_custom_call.1} parent=1 // pred_check_branch
      %44 = sbr.rel (0) target = $region21
    $region20: #{tpu_custom_call.1} parent=1 // pred_region
      %46 = dma.done [#allocation6], 1024
    $region21: #{tpu_custom_call.1} parent=1 // pred_fallthru
      _
    %v47 = vld [vmem:[#allocation2] sm:$0xf]
    %v48 = vld [vmem:[#allocation2 + $0x4] sm:$0xf]
    %v49 = vld [vmem:[#allocation2 + $0x8] sm:$0xf]
    %v50 = vld [vmem:[#allocation2 + $0xc] sm:$0xf]
    %v51 = vld [vmem:[#allocation2 + $0x10] sm:$0xf]
    %v52 = vld [vmem:[#allocation2 + $0x14] sm:$0xf]
    %v53 = vld [vmem:[#allocation2 + $0x18] sm:$0xf]
    %v54 = vld [vmem:[#allocation2 + $0x1c] sm:$0xf]
    %v55 = vld [vmem:[#allocation2 + $0x20] sm:$0xf]
    %v56 = vld [vmem:[#allocation2 + $0x24] sm:$0xf]
    %v57 = vld [vmem:[#allocation2 + $0x28] sm:$0xf]
    %v58 = vld [vmem:[#allocation2 + $0x2c] sm:$0xf]
    %v59 = vld [vmem:[#allocation2 + $0x30] sm:$0xf]
    %v60 = vld [vmem:[#allocation2 + $0x34] sm:$0xf]
    %v61 = vld [vmem:[#allocation2 + $0x38] sm:$0xf]
    %v62 = vld [vmem:[#allocation2 + $0x3c] sm:$0xf]
    %v63 = vld [vmem:[#allocation5] sm:$0xf]
    %v64 = vld [vmem:[#allocation5 + $0x4] sm:$0xf]
    %v65 = vld [vmem:[#allocation5 + $0x8] sm:$0xf]
    %v66 = vld [vmem:[#allocation5 + $0xc] sm:$0xf]
    %v67 = vld [vmem:[#allocation5 + $0x10] sm:$0xf]
    %v68 = vld [vmem:[#allocation5 + $0x14] sm:$0xf]
    %v69 = vld [vmem:[#allocation5 + $0x18] sm:$0xf]
    %v70 = vld [vmem:[#allocation5 + $0x1c] sm:$0xf]
    %v71 = vld [vmem:[#allocation5 + $0x20] sm:$0xf]
    %v72 = vld [vmem:[#allocation5 + $0x24] sm:$0xf]
    %v73 = vld [vmem:[#allocation5 + $0x28] sm:$0xf]
    %v74 = vld [vmem:[#allocation5 + $0x2c] sm:$0xf]
    %v75 = vld [vmem:[#allocation5 + $0x30] sm:$0xf]
    %v76 = vld [vmem:[#allocation5 + $0x34] sm:$0xf]
    %v77 = vld [vmem:[#allocation5 + $0x38] sm:$0xf]
    %v78 = vld [vmem:[#allocation5 + $0x3c] sm:$0xf]
    %v79 = vld [vmem:[%s2] sm:$0x1]
    %v81 = vperm.slane %v79, 0
    %v99 = vunpack.c.l.b16 %v47
    %v100 = vunpack.c.l.b16 %v48
    %v101 = vunpack.c.l.b16 %v49
    %v102 = vunpack.c.l.b16 %v50
    %v103 = vunpack.c.l.b16 %v51
    %v104 = vunpack.c.l.b16 %v52
    %v105 = vunpack.c.l.b16 %v53
    %v106 = vunpack.c.l.b16 %v54
    %v107 = vunpack.c.l.b16 %v55
    %v108 = vunpack.c.l.b16 %v56
    %v109 = vunpack.c.l.b16 %v57
    %v110 = vunpack.c.l.b16 %v58
    %v111 = vunpack.c.l.b16 %v59
    %v112 = vunpack.c.l.b16 %v60
    %v113 = vunpack.c.l.b16 %v61
    %v114 = vunpack.c.l.b16 %v62
    %v115 = vpack.c.b16 %v100, %v99
    %v116 = vpack.c.b16 %v102, %v101
    %v117 = vpack.c.b16 %v104, %v103
    %v118 = vpack.c.b16 %v106, %v105
    %v119 = vpack.c.b16 %v108, %v107
    %v120 = vpack.c.b16 %v110, %v109
    %v121 = vpack.c.b16 %v112, %v111
    %v122 = vpack.c.b16 %v114, %v113
    %v147 = vunpack.c.l.b16 %v63
    %v148 = vunpack.c.l.b16 %v64
    %v149 = vunpack.c.l.b16 %v65
    %v150 = vunpack.c.l.b16 %v66
    %v151 = vunpack.c.l.b16 %v67
    %v152 = vunpack.c.l.b16 %v68
    %v153 = vunpack.c.l.b16 %v69
    %v154 = vunpack.c.l.b16 %v70
    %v155 = vunpack.c.l.b16 %v71
    %v156 = vunpack.c.l.b16 %v72
    %v157 = vunpack.c.l.b16 %v73
    %v158 = vunpack.c.l.b16 %v74
    %v159 = vunpack.c.l.b16 %v75
    %v160 = vunpack.c.l.b16 %v76
    %v161 = vunpack.c.l.b16 %v77
    %v162 = vunpack.c.l.b16 %v78
    %v163 = vpack.c.b16 %v148, %v147
    %v164 = vpack.c.b16 %v150, %v149
    %v165 = vpack.c.b16 %v152, %v151
    %v166 = vpack.c.b16 %v154, %v153
    %v167 = vpack.c.b16 %v156, %v155
    %v168 = vpack.c.b16 %v158, %v157
    %v169 = vpack.c.b16 %v160, %v159
    %v170 = vpack.c.b16 %v162, %v161
    %179 = vmatpush.bf16.msra.mxu0 %v170
    %180 = vmatpush.bf16.msra.mxu0 %v169
    %181 = vmatpush.bf16.msra.mxu0 %v168
    %182 = vmatpush.bf16.msra.mxu0 %v167
    %183 = vmatpush.bf16.msra.mxu0 %v166
    %184 = vmatpush.bf16.msra.mxu0 %v165
    %185 = vmatpush.bf16.msra.mxu0 %v164
    %186 = vmatpush.bf16.msra.mxu0 %v163
    %187 = vmatmul.bf16.gmra.mxu0 %v115
    %v188 = vpop.f32.mrf.mxu0
    %v189 = vadd.f32 %v81, %v188
    %v190 = vpop.f32.mrf.mxu0
    %v191 = vadd.f32 %v81, %v190
    %192 = vmatmul.bf16.gmra.mxu0 %v116
    %v193 = vpop.f32.mrf.mxu0
    %v194 = vadd.f32 %v81, %v193
    %v195 = vpop.f32.mrf.mxu0
    %v196 = vadd.f32 %v81, %v195
    %197 = vmatmul.bf16.gmra.mxu0 %v117
    %v198 = vpop.f32.mrf.mxu0
    %v199 = vadd.f32 %v81, %v198
    %v200 = vpop.f32.mrf.mxu0
    %v201 = vadd.f32 %v81, %v200
    %202 = vmatmul.bf16.gmra.mxu0 %v118
    %v203 = vpop.f32.mrf.mxu0
    %v204 = vadd.f32 %v81, %v203
    %v205 = vpop.f32.mrf.mxu0
    %v206 = vadd.f32 %v81, %v205
    %207 = vmatmul.bf16.gmra.mxu0 %v119
    %v208 = vpop.f32.mrf.mxu0
    %v209 = vadd.f32 %v81, %v208
    %v210 = vpop.f32.mrf.mxu0
    %v211 = vadd.f32 %v81, %v210
    %212 = vmatmul.bf16.gmra.mxu0 %v120
    %v213 = vpop.f32.mrf.mxu0
    %v214 = vadd.f32 %v81, %v213
    %v215 = vpop.f32.mrf.mxu0
    %v216 = vadd.f32 %v81, %v215
    %217 = vmatmul.bf16.gmra.mxu0 %v121
    %v218 = vpop.f32.mrf.mxu0
    %v219 = vadd.f32 %v81, %v218
    %v220 = vpop.f32.mrf.mxu0
    %v221 = vadd.f32 %v81, %v220
    %222 = vmatmul.bf16.gmra.mxu0 %v122
    %v223 = vpop.f32.mrf.mxu0
    %v224 = vadd.f32 %v81, %v223
    %v225 = vpop.f32.mrf.mxu0
    %v226 = vadd.f32 %v81, %v225
    %227 = vdwg.mxu0
    %228 = vst [vmem:[#allocation7] sm:$0xff] %v189
    %229 = vst [vmem:[#allocation7 + $0x8] sm:$0xff] %v191
    %230 = vst [vmem:[#allocation7 + $0x10] sm:$0xff] %v194
    %231 = vst [vmem:[#allocation7 + $0x18] sm:$0xff] %v196
    %232 = vst [vmem:[#allocation7 + $0x20] sm:$0xff] %v199
    %233 = vst [vmem:[#allocation7 + $0x28] sm:$0xff] %v201
    %234 = vst [vmem:[#allocation7 + $0x30] sm:$0xff] %v204
    %235 = vst [vmem:[#allocation7 + $0x38] sm:$0xff] %v206
    %236 = vst [vmem:[#allocation7 + $0x40] sm:$0xff] %v209
    %237 = vst [vmem:[#allocation7 + $0x48] sm:$0xff] %v211
    %238 = vst [vmem:[#allocation7 + $0x50] sm:$0xff] %v214
    %239 = vst [vmem:[#allocation7 + $0x58] sm:$0xff] %v216
    %240 = vst [vmem:[#allocation7 + $0x60] sm:$0xff] %v219
    %241 = vst [vmem:[#allocation7 + $0x68] sm:$0xff] %v221
    %242 = vst [vmem:[#allocation7 + $0x70] sm:$0xff] %v224
    %243 = vst [vmem:[#allocation7 + $0x78] sm:$0xff] %v226
    // Predicated region
    $region22: #{tpu_custom_call.1} parent=1 // pred_check
      _
    $region23: #{tpu_custom_call.1} parent=1 // pred_check_branch
      %245 = sbr.rel (0) target = $region25
    $region24: #{tpu_custom_call.1} parent=1 // pred_region
      %247 = vsyncadd [#allocation4], 0
      %s248 = sshll.u32 [#allocation7], 4
      %s249 = int_to_ptr.vmem [resolvable:$true] %s248
      %s250 = sshll.u32 %s3, 4
      %s251 = int_to_ptr.hbm [resolvable:$true] %s250
      %256 = dma.vmem_to_hbm [thread:$0]  %s249, 2048, %s251, [#allocation4], 128, 128, 8
    $region25: #{tpu_custom_call.1} parent=1 // pred_fallthru
      _
    // Predicated region
    $region26: #{tpu_custom_call.1} parent=1 // pred_check
      _
    $region27: #{tpu_custom_call.1} parent=1 // pred_check_branch
      %258 = sbr.rel (0) target = $region29
    $region28: #{tpu_custom_call.1} parent=1 // pred_region
      %260 = dma.done [#allocation4], 2048
    $region29: #{tpu_custom_call.1} parent=1 // pred_fallthru
      _
    %261 = vsyncpa [#allocation3], 1
    %262 = vsyncpa [#allocation6], 1
    %263 = vsyncpa [#allocation4], 1

</llo_original>
